<compile_context>
chip_gen: v5e
topology: v5e:2x2
jax: 0.10.0
libtpu: 0.0.40
codegen_flags: <defaults>
</compile_context>

<pallas_src>
import functools
import math

import jax
import jax.numpy as jnp
from jax import lax
from jax.experimental import pallas as pl
from jax.experimental.pallas import tpu as pltpu


# ------------------------------ tiling helpers ------------------------------

def _tile(dim, max_tile, step):
    """Largest multiple of `step` that divides `dim` and is <= max_tile.

    Falls back to the full dimension (always legal: block == full array dim).
    """
    if dim <= max_tile:
        return dim
    t = (max_tile // step) * step
    while t >= step:
        if dim % t == 0:
            return t
        t -= step
    return dim


# ----------------------------- Pallas kernels ------------------------------

def _linear_kernel(x_ref, w_ref, b_ref, o_ref, acc_ref, *, relu):
    # x: [tm, tk], w: [tk, tn] (weights stored pre-transposed), b: [1, tn]
    k = pl.program_id(2)

    @pl.when(k == 0)
    def _():
        acc_ref[...] = jnp.zeros_like(acc_ref)

    acc_ref[...] += jnp.dot(x_ref[...], w_ref[...],
                            preferred_element_type=jnp.float32)

    @pl.when(k == pl.num_programs(2) - 1)
    def _():
        acc = acc_ref[...] + b_ref[...].astype(jnp.float32)
        if relu:
            acc = jnp.maximum(acc, 0.0)
        o_ref[...] = acc.astype(o_ref.dtype)


def linear(x, w, b, relu=False):
    """y = x @ w + b.  x:[M,K], w:[K,N] (pre-transposed from torch [N,K]), b:[N]."""
    M, K = x.shape
    N = w.shape[1]
    tm = _tile(M, 256, 8)
    tn = _tile(N, 512, 128)
    tk = _tile(K, 512, 128)
    grid = (M // tm, N // tn, K // tk)
    return pl.pallas_call(
        functools.partial(_linear_kernel, relu=relu),
        out_shape=jax.ShapeDtypeStruct((M, N), x.dtype),
        grid=grid,
        in_specs=[
            pl.BlockSpec((tm, tk), lambda i, j, k: (i, k)),
            pl.BlockSpec((tk, tn), lambda i, j, k: (k, j)),
            pl.BlockSpec((1, tn), lambda i, j, k: (0, j)),
        ],
        out_specs=pl.BlockSpec((tm, tn), lambda i, j, k: (i, j)),
        scratch_shapes=[pltpu.VMEM((tm, tn), jnp.float32)],
        compiler_params=pltpu.CompilerParams(
            dimension_semantics=("parallel", "parallel", "arbitrary")),
    )(x, w, b.reshape(1, N))


def _add_layernorm_kernel(x_ref, r_ref, g_ref, b_ref, o_ref, *, eps):
    # Fused residual add + LayerNorm over the last dim.
    x = x_ref[...].astype(jnp.float32) + r_ref[...].astype(jnp.float32)
    mu = jnp.mean(x, axis=-1, keepdims=True)
    xc = x - mu
    var = jnp.mean(xc * xc, axis=-1, keepdims=True)
    y = xc * lax.rsqrt(var + eps)
    o_ref[...] = (y * g_ref[...] + b_ref[...]).astype(o_ref.dtype)


def add_layernorm(x, resid, gamma, beta, eps=1e-5):
    M, D = x.shape
    tm = _tile(M, 512, 8)
    return pl.pallas_call(
        functools.partial(_add_layernorm_kernel, eps=eps),
        out_shape=jax.ShapeDtypeStruct((M, D), x.dtype),
        grid=(M // tm,),
        in_specs=[
            pl.BlockSpec((tm, D), lambda i: (i, 0)),
            pl.BlockSpec((tm, D), lambda i: (i, 0)),
            pl.BlockSpec((1, D), lambda i: (0, 0)),
            pl.BlockSpec((1, D), lambda i: (0, 0)),
        ],
        out_specs=pl.BlockSpec((tm, D), lambda i: (i, 0)),
        compiler_params=pltpu.CompilerParams(dimension_semantics=("parallel",)),
    )(x, resid, gamma.reshape(1, D), beta.reshape(1, D))


def _attn_kernel(qkv_ref, o_ref, *, num_heads, head_dim, scale, causal):
    # qkv_ref: [1, S, 3H].  All heads of one batch element per grid step.
    # TODO(synk): for long sequences, convert to a flash-style online-softmax
    # kernel tiled over the KV axis instead of materializing the SxS scores.
    S = qkv_ref.shape[1]
    H = num_heads * head_dim
    qkv = qkv_ref[0].astype(jnp.float32)            # [S, 3H]

    if causal:
        row = lax.broadcasted_iota(jnp.int32, (S, S), 0)
        col = lax.broadcasted_iota(jnp.int32, (S, S), 1)
        neg = jnp.where(col > row, jnp.float32(-1e30), jnp.float32(0.0))

    outs = []
    for h in range(num_heads):                      # static loop over heads
        q = qkv[:, h * head_dim:(h + 1) * head_dim]
        k = qkv[:, H + h * head_dim:H + (h + 1) * head_dim]
        v = qkv[:, 2 * H + h * head_dim:2 * H + (h + 1) * head_dim]
        s = lax.dot_general(q, k, (((1,), (1,)), ((), ())),
                            preferred_element_type=jnp.float32) * scale
        if causal:
            s = s + neg
        mx = jnp.max(s, axis=-1, keepdims=True)
        p = jnp.exp(s - mx)
        denom = jnp.sum(p, axis=-1, keepdims=True)
        p = p * pl.reciprocal(denom, approx=True)   # divide on the EUP slot
        outs.append(jnp.dot(p, v, preferred_element_type=jnp.float32))

    # Single lane-dense [S, H] store (heads merged along the lane axis).
    o_ref[0] = jnp.concatenate(outs, axis=-1).astype(o_ref.dtype)


def mha_attention(qkv, num_heads, head_dim, causal):
    """qkv: [B, S, 3H] (packed in_proj output); returns [B, S, H]."""
    B, S, threeH = qkv.shape
    H = num_heads * head_dim
    return pl.pallas_call(
        functools.partial(_attn_kernel, num_heads=num_heads, head_dim=head_dim,
                          scale=1.0 / math.sqrt(head_dim), causal=causal),
        out_shape=jax.ShapeDtypeStruct((B, S, H), qkv.dtype),
        grid=(B,),
        in_specs=[pl.BlockSpec((1, S, threeH), lambda b: (b, 0, 0))],
        out_specs=pl.BlockSpec((1, S, H), lambda b: (b, 0, 0)),
        compiler_params=pltpu.CompilerParams(dimension_semantics=("parallel",)),
    )(qkv)


def _fc_head_kernel(x_ref, w1_ref, b1_ref, g_ref, be_ref, w2_ref, b2_ref, o_ref,
                    *, eps, normalize):
    # Fused: Linear(H->256) -> ReLU -> LayerNorm(256) -> Linear(256->6)
    #        -> optional sigmoid + per-group (3/3) normalization.
    h = jnp.dot(x_ref[...], w1_ref[...], preferred_element_type=jnp.float32)
    h = h + b1_ref[...].astype(jnp.float32)
    h = jnp.maximum(h, 0.0)
    mu = jnp.mean(h, axis=-1, keepdims=True)
    hc = h - mu
    var = jnp.mean(hc * hc, axis=-1, keepdims=True)
    h = hc * lax.rsqrt(var + eps) * g_ref[...] + be_ref[...]
    y = jnp.dot(h, w2_ref[...], preferred_element_type=jnp.float32)
    y = y + b2_ref[...].astype(jnp.float32)         # [tm, 6]
    if normalize:
        y = jax.nn.sigmoid(y)
        idx = lax.broadcasted_iota(jnp.int32, y.shape, 1)
        is_students = idx < 3
        s_sum = jnp.sum(jnp.where(is_students, y, 0.0), axis=1, keepdims=True)
        a_sum = jnp.sum(jnp.where(is_students, 0.0, y), axis=1, keepdims=True)
        y = y / (jnp.where(is_students, s_sum, a_sum) + 1e-8)
    o_ref[...] = y.astype(o_ref.dtype)


def fc_head(x, params, normalize):
    M, H = x.shape
    D1 = params["fc1_w"].shape[1]                   # 256
    D2 = params["fc2_w"].shape[1]                   # 6
    tm = _tile(M, 256, 8)
    return pl.pallas_call(
        functools.partial(_fc_head_kernel, eps=1e-5, normalize=normalize),
        out_shape=jax.ShapeDtypeStruct((M, D2), x.dtype),
        grid=(M // tm,),
        in_specs=[
            pl.BlockSpec((tm, H), lambda i: (i, 0)),
            pl.BlockSpec((H, D1), lambda i: (0, 0)),
            pl.BlockSpec((1, D1), lambda i: (0, 0)),
            pl.BlockSpec((1, D1), lambda i: (0, 0)),
            pl.BlockSpec((1, D1), lambda i: (0, 0)),
            pl.BlockSpec((D1, D2), lambda i: (0, 0)),
            pl.BlockSpec((1, D2), lambda i: (0, 0)),
        ],
        out_specs=pl.BlockSpec((tm, D2), lambda i: (i, 0)),
        compiler_params=pltpu.CompilerParams(dimension_semantics=("parallel",)),
    )(x, params["fc1_w"], params["fc1_b"].reshape(1, D1),
      params["fc_ln_g"].reshape(1, D1), params["fc_ln_b"].reshape(1, D1),
      params["fc2_w"], params["fc2_b"].reshape(1, D2))


# ------------------------- model (glue + kernels) ---------------------------

def encoder_layer(x2d, B, S, p, num_heads, causal):
    """One nn.TransformerEncoderLayer (post-norm, ReLU FFN, batch_first), eval mode."""
    H = x2d.shape[1]
    dh = H // num_heads

    # self-attention (packed qkv; head split / merge happen inside the kernel)
    qkv = linear(x2d, p["in_proj_w"], p["in_proj_b"])            # [B*S, 3H]
    attn = mha_attention(qkv.reshape(B, S, 3 * H), num_heads, dh, causal)
    attn_out = linear(attn.reshape(B * S, H), p["out_proj_w"], p["out_proj_b"])

    h = add_layernorm(x2d, attn_out, p["ln1_g"], p["ln1_b"])     # residual + norm1

    # feed-forward (Linear -> ReLU -> Linear)
    ff = linear(h, p["lin1_w"], p["lin1_b"], relu=True)
    ff = linear(ff, p["lin2_w"], p["lin2_b"])
    return add_layernorm(h, ff, p["ln2_g"], p["ln2_b"])          # residual + norm2


def model_forward(params, x_sir, x_interventions, x_static,
                  is_deltas=False, return_sequence=False):
    # 2-D inputs are treated as a seq-1 sequence (matches the PyTorch 2-D path,
    # which unsqueezes and skips positional encoding / masking).
    if x_sir.ndim == 2:
        x_sir = x_sir[:, None, :]
        x_interventions = x_interventions[:, None, :]
        x_static = x_static[:, None, :]

    x = jnp.concatenate([x_sir, x_interventions, x_static], axis=2)
    B, S, F = x.shape
    H = params["hidden"]
    nh = params["num_heads"]

    x2d = linear(x.reshape(B * S, F), params["in_w"], params["in_b"])   # [B*S, H]

    if S > 1:
        # learned positional encoding (dropout is identity in eval mode);
        # the PyTorch module also skips it (and the causal mask) when seq_len == 1.
        x2d = (x2d.reshape(B, S, H) + params["pos_emb"][:S][None, :, :]).reshape(B * S, H)
        causal = True
    else:
        causal = False

    for layer_p in params["layers"]:
        x2d = encoder_layer(x2d, B, S, layer_p, nh, causal)

    # fused fc head: Linear -> ReLU -> LayerNorm -> Linear (-> head normalize)
    out = fc_head(x2d, params, normalize=not is_deltas)          # [B*S, 6]
    processed = out.reshape(B, S, 6)

    if return_sequence:
        return processed
    return processed[:, -1, :]


# ------------------------------ parameters ----------------------------------

def init_params(key, input_size, hidden, num_layers, num_heads, ffn=2048):
    keys = [key]

    def nxt():
        keys[0], sub = jax.random.split(keys[0])
        return sub

    def dense(in_f, out_f):
        # weights stored pre-transposed as [in, out] so the forward pass never
        # pays an HBM transpose.
        w = jax.random.normal(nxt(), (in_f, out_f), jnp.float32) * 0.02
        b = jax.random.normal(nxt(), (out_f,), jnp.float32) * 0.02
        return w, b

    params = {"hidden": hidden, "num_heads": num_heads}
    params["in_w"], params["in_b"] = dense(input_size, hidden)
    params["pos_emb"] = jax.random.normal(nxt(), (5000, hidden), jnp.float32) * 0.02

    layers = []
    for _ in range(num_layers):
        p = {}
        p["in_proj_w"], p["in_proj_b"] = dense(hidden, 3 * hidden)
        p["out_proj_w"], p["out_proj_b"] = dense(hidden, hidden)
        p["lin1_w"], p["lin1_b"] = dense(hidden, ffn)
        p["lin2_w"], p["lin2_b"] = dense(ffn, hidden)
        p["ln1_g"] = jnp.ones((hidden,), jnp.float32)
        p["ln1_b"] = jnp.zeros((hidden,), jnp.float32)
        p["ln2_g"] = jnp.ones((hidden,), jnp.float32)
        p["ln2_b"] = jnp.zeros((hidden,), jnp.float32)
        layers.append(p)
    params["layers"] = layers

    params["fc1_w"], params["fc1_b"] = dense(hidden, 256)
    params["fc_ln_g"] = jnp.ones((256,), jnp.float32)
    params["fc_ln_b"] = jnp.zeros((256,), jnp.float32)
    params["fc2_w"], params["fc2_b"] = dense(256, 6)
    return params


# --------------------------------- main --------------------------------------

if __name__ == "__main__":
    key = jax.random.PRNGKey(0)
    B, S = 2, 8
    f_sir, f_int, f_stat = 4, 6, 6
    input_size = f_sir + f_int + f_stat          # 16
    hidden, num_layers, num_heads = 32, 2, 4     # small but structurally faithful

    kp, k1, k2, k3 = jax.random.split(key, 4)
    params = init_params(kp, input_size, hidden, num_layers, num_heads, ffn=2048)

    x_sir = jax.random.normal(k1, (B, S, f_sir), jnp.float32)
    x_interventions = jax.random.normal(k2, (B, S, f_int), jnp.float32)
    x_static = jax.random.normal(k3, (B, S, f_stat), jnp.float32)

    out = model_forward(params, x_sir, x_interventions, x_static,
                        is_deltas=False, return_sequence=False)
    out = jax.block_until_ready(out)
    assert out.shape == (B, 6), out.shape
    assert bool(jnp.all(jnp.isfinite(out)))
    print("KERNEL_OK")
</pallas_src>

<mosaic_0001>
module attributes {stable_mosaic.version = 11 : i64} {
  func.func @_linear_kernel(%arg0: i32, %arg1: i32, %arg2: i32, %arg3: memref<16x16xf32, #tpu.memory_space<vmem>>, %arg4: memref<16x32xf32, #tpu.memory_space<vmem>>, %arg5: memref<1x32xf32, #tpu.memory_space<vmem>>, %arg6: memref<16x32xf32, #tpu.memory_space<vmem>>, %arg7: memref<16x32xf32, #tpu.memory_space<vmem>>) attributes {dimension_semantics = [#tpu.dimension_semantics<parallel>, #tpu.dimension_semantics<parallel>, #tpu.dimension_semantics<arbitrary>], iteration_bounds = array<i64: 1, 1, 1>, scalar_prefetch = 0 : i64, scratch_operands = 1 : i64, tpu.core_type = #tpu.core_type<tc>, window_params = [{transform_indices = @transform_0, window_bounds = array<i64: 16, 16>}, {transform_indices = @transform_1, window_bounds = array<i64: 16, 32>}, {transform_indices = @transform_2, window_bounds = array<i64: 1, 32>}, {transform_indices = @transform_3, window_bounds = array<i64: 16, 32>}]} {
    %c0_i32 = arith.constant 0 : i32
    %0 = arith.cmpi eq, %arg2, %c0_i32 : i32
    %1 = arith.extui %0 : i1 to i32
    %c0_i32_0 = arith.constant 0 : i32
    %2 = arith.cmpi ne, %1, %c0_i32_0 : i32
    scf.if %2 {
      %cst_10 = arith.constant 0.000000e+00 : f32
      %12 = vector.broadcast %cst_10 : f32 to vector<16x32xf32>
      %c0_11 = arith.constant 0 : index
      %c0_12 = arith.constant 0 : index
      %13 = vector.load %arg7[%c0_11, %c0_12] : memref<16x32xf32, #tpu.memory_space<vmem>>, vector<16x32xf32>
      tpu.vector_store %arg7[%c0_11, %c0_12], %12 {strides = array<i32>} : memref<16x32xf32, #tpu.memory_space<vmem>>, vector<16x32xf32>,
    } else {
    }
    %c0 = arith.constant 0 : index
    %c0_1 = arith.constant 0 : index
    %3 = vector.load %arg7[%c0, %c0_1] : memref<16x32xf32, #tpu.memory_space<vmem>>, vector<16x32xf32>
    %c0_2 = arith.constant 0 : index
    %c0_3 = arith.constant 0 : index
    %4 = vector.load %arg3[%c0_2, %c0_3] : memref<16x16xf32, #tpu.memory_space<vmem>>, vector<16x16xf32>
    %c0_4 = arith.constant 0 : index
    %c0_5 = arith.constant 0 : index
    %5 = vector.load %arg4[%c0_4, %c0_5] : memref<16x32xf32, #tpu.memory_space<vmem>>, vector<16x32xf32>
    %cst = arith.constant dense<0.000000e+00> : vector<16x32xf32>
    %6 = tpu.matmul %4, %5, %cst {dimension_numbers = #tpu.dot_dimension_numbers<[1], [0], [0], [1], [0, 0, 1, 1], [], []>} : vector<16x16xf32>, vector<16x32xf32>, vector<16x32xf32> -> vector<16x32xf32>
    %7 = arith.addf %3, %6 : vector<16x32xf32>
    %c0_6 = arith.constant 0 : index
    %c0_7 = arith.constant 0 : index
    %8 = vector.load %arg7[%c0_6, %c0_7] : memref<16x32xf32, #tpu.memory_space<vmem>>, vector<16x32xf32>
    tpu.vector_store %arg7[%c0_6, %c0_7], %7 {strides = array<i32>} : memref<16x32xf32, #tpu.memory_space<vmem>>, vector<16x32xf32>,
    %c0_i32_8 = arith.constant 0 : i32
    %9 = arith.cmpi eq, %arg2, %c0_i32_8 : i32
    %10 = arith.extui %9 : i1 to i32
    %c0_i32_9 = arith.constant 0 : i32
    %11 = arith.cmpi ne, %10, %c0_i32_9 : i32
    scf.if %11 {
      %c0_10 = arith.constant 0 : index
      %c0_11 = arith.constant 0 : index
      %12 = vector.load %arg7[%c0_10, %c0_11] : memref<16x32xf32, #tpu.memory_space<vmem>>, vector<16x32xf32>
      %c0_12 = arith.constant 0 : index
      %c0_13 = arith.constant 0 : index
      %13 = vector.load %arg5[%c0_12, %c0_13] : memref<1x32xf32, #tpu.memory_space<vmem>>, vector<1x32xf32>
      %14 = vector.broadcast %13 : vector<1x32xf32> to vector<16x32xf32>
      %15 = arith.addf %12, %14 : vector<16x32xf32>
      %c0_14 = arith.constant 0 : index
      %c0_15 = arith.constant 0 : index
      %16 = vector.load %arg6[%c0_14, %c0_15] : memref<16x32xf32, #tpu.memory_space<vmem>>, vector<16x32xf32>
      tpu.vector_store %arg6[%c0_14, %c0_15], %15 {strides = array<i32>} : memref<16x32xf32, #tpu.memory_space<vmem>>, vector<16x32xf32>,
    } else {
    }
    return
  }
  func.func @transform_0(%arg0: i32, %arg1: i32, %arg2: i32) -> (i32, i32) {
    %c0_i32 = arith.constant 0 : i32
    return %arg0, %arg2 : i32, i32
  }
  func.func @transform_1(%arg0: i32, %arg1: i32, %arg2: i32) -> (i32, i32) {
    %c0_i32 = arith.constant 0 : i32
    return %arg2, %arg1 : i32, i32
  }
  func.func @transform_2(%arg0: i32, %arg1: i32, %arg2: i32) -> (i32, i32) {
    %c0_i32 = arith.constant 0 : i32
    %c0_i32_0 = arith.constant 0 : i32
    return %c0_i32, %arg1 : i32, i32
  }
  func.func @transform_3(%arg0: i32, %arg1: i32, %arg2: i32) -> (i32, i32) {
    %c0_i32 = arith.constant 0 : i32
    return %arg0, %arg1 : i32, i32
  }
}

</mosaic_0001>

<llo_original>
// kernel: tpu_custom_call.1
$region0: #{tpu_custom_call.1}
  #allocation0 [shape = 'u32[]', space=smem, size = 0x4, offset = 0x4, fixed_abs, tag = 'smem constant byte address 0x4 - core index']
  #allocation1 [shape = 'u32[72,128]{1,0:T(1,128)}', space=vmem, size = 0x9000, scoped, tag = 'internal scratch']
  #allocation2 [shape = 'f32[16,32]{1,0:T(8,128)}', space=vmem, size = 0x2000, scoped, tag = 'scratch operand']
  %s0 = inlined_call_operand.hbm [shape: f32[16,16], index: 0, kind: input, shape index: {}]
  %s1 = inlined_call_operand.hbm [shape: f32[16,32], index: 1, kind: input, shape index: {}]
  %s2 = inlined_call_operand.vmem [shape: f32[1,32], index: 2, kind: input, shape index: {}]
  %s3 = inlined_call_operand.hbm [shape: f32[16,32], index: 3, kind: output, shape index: {}]
  %s4 = sld [smem:[#allocation0]]
  $region38: #{tpu_custom_call.1} parent=0
    _
  %s6 = ssub.s32 1, %s4
  %s7 = scalar_select 0, %s6, %s4
  $region1: #{tpu_custom_call.1} parent=0
    #allocation3 [shape = 'u8[8192]{0}', space=vmem, size = 0x2000, scoped, tag = 'input window, operand 0, single buffered']
    #allocation4 [shape = 's32[1]{0}', space=sflag, size = 0x4, scoped, tag = 'scoped memory for tpu_custom_call.1']
    #allocation5 [shape = 's32[1]{0}', space=sflag, size = 0x4, scoped, tag = 'scoped memory for tpu_custom_call.1']
    #allocation6 [shape = 'u8[8192]{0}', space=vmem, size = 0x2000, scoped, tag = 'input window, operand 1, single buffered']
    #allocation7 [shape = 's32[1]{0}', space=sflag, size = 0x4, scoped, tag = 'scoped memory for tpu_custom_call.1']
    #allocation8 [shape = 'u8[8192]{0}', space=vmem, size = 0x2000, scoped, tag = 'output window, operand 0, single buffered']
    %8 = vsyncpa [#allocation4], 0
    %9 = vsyncpa [#allocation7], 0
    %10 = vsyncpa [#allocation5], 0
    // Predicated region
    $region2: #{tpu_custom_call.1} parent=1 // pred_check
      _
    $region3: #{tpu_custom_call.1} parent=1 // pred_check_branch
      %12 = sbr.rel (0) target = $region5
    $region4: #{tpu_custom_call.1} parent=1 // pred_region
      %14 = vsyncadd [#allocation4], 0
      %s15 = sshll.u32 %s0, 4
      %s16 = int_to_ptr.hbm [resolvable:$true] %s15
      %s17 = sshll.u32 [#allocation3], 4
      %s18 = int_to_ptr.vmem [resolvable:$true] %s17
      %23 = dma.hbm_to_vmem [thread:$0]  %s16, 256, %s18, [#allocation4], 128, 128, 8
    $region5: #{tpu_custom_call.1} parent=1 // pred_fallthru
      _
    // Predicated region
    $region6: #{tpu_custom_call.1} parent=1 // pred_check
      _
    $region7: #{tpu_custom_call.1} parent=1 // pred_check_branch
      %25 = sbr.rel (0) target = $region9
    $region8: #{tpu_custom_call.1} parent=1 // pred_region
      %27 = vsyncadd [#allocation7], 0
      %s28 = sshll.u32 %s1, 4
      %s29 = int_to_ptr.hbm [resolvable:$true] %s28
      %s30 = sshll.u32 [#allocation6], 4
      %s31 = int_to_ptr.vmem [resolvable:$true] %s30
      %36 = dma.hbm_to_vmem [thread:$0]  %s29, 256, %s31, [#allocation7], 128, 128, 8
    $region9: #{tpu_custom_call.1} parent=1 // pred_fallthru
      _
    // Predicated region
    $region10: #{tpu_custom_call.1} parent=1 // pred_check
      _
    $region11: #{tpu_custom_call.1} parent=1 // pred_check_branch
      %38 = sbr.rel (0) target = $region13
    $region12: #{tpu_custom_call.1} parent=1 // pred_region
      _
    $region13: #{tpu_custom_call.1} parent=1 // pred_fallthru
      _
    // Predicated region
    $region14: #{tpu_custom_call.1} parent=1 // pred_check
      _
    $region15: #{tpu_custom_call.1} parent=1 // pred_check_branch
      %40 = sbr.rel (0) target = $region17
    $region16: #{tpu_custom_call.1} parent=1 // pred_region
      %42 = dma.done [#allocation4], 256
    $region17: #{tpu_custom_call.1} parent=1 // pred_fallthru
      _
    // Predicated region
    $region18: #{tpu_custom_call.1} parent=1 // pred_check
      _
    $region19: #{tpu_custom_call.1} parent=1 // pred_check_branch
      %44 = sbr.rel (0) target = $region21
    $region20: #{tpu_custom_call.1} parent=1 // pred_region
      %46 = dma.done [#allocation7], 256
    $region21: #{tpu_custom_call.1} parent=1 // pred_fallthru
      _
    %p47 = scmp.eq.s32.totalorder 0, 0
    // Predicated region
    $region22: #{tpu_custom_call.1} parent=1 // pred_check
      %p48 = pneg %p47
    $region23: #{tpu_custom_call.1} parent=1 // pred_check_branch
      %50 = sbr.rel (%p48) target = $region25
    $region24: #{tpu_custom_call.1} parent=1 // pred_region
      %vm51 = vcmask 261120
      %52 = vst.msk [vmem:[#allocation2] sm:$0xff] %vm51, 0.0
      %53 = vst.msk [vmem:[#allocation2 + $0x8] sm:$0xff] %vm51, 0.0
    $region25: #{tpu_custom_call.1} parent=1 // pred_fallthru
      _
    %v54 = vld [vmem:[#allocation2] sm:$0xff]
    %v55 = vld [vmem:[#allocation2 + $0x8] sm:$0xff]
    %v56 = vld [vmem:[#allocation3] sm:$0xff]
    %v57 = vld [vmem:[#allocation3 + $0x8] sm:$0xff]
    %v58 = vld [vmem:[#allocation6] sm:$0xff]
    %v59 = vld [vmem:[#allocation6 + $0x8] sm:$0xff]
    %vm60 = vcmask 130048
    %v62 = vsel %vm60, %v56, 0
    %v65 = vsel %vm60, %v57, 0
    %67 = vmatpush.msra.mxu0 0.0
    %68 = vmatpush.msra.mxu0 0.0
    %69 = vmatpush.msra.mxu0 0.0
    %70 = vmatpush.msra.mxu0 0.0
    %71 = vmatpush.msra.mxu0 0.0
    %72 = vmatpush.msra.mxu0 0.0
    %73 = vmatpush.msra.mxu0 0.0
    %74 = vmatpush.msra.mxu0 0.0
    %75 = vmatpush.msra.mxu0 0.0
    %76 = vmatpush.msra.mxu0 0.0
    %77 = vmatpush.msra.mxu0 0.0
    %78 = vmatpush.msra.mxu0 0.0
    %79 = vmatpush.msra.mxu0 0.0
    %80 = vmatpush.msra.mxu0 0.0
    %81 = vmatpush.msra.mxu0 %v59
    %82 = vmatpush.msra.mxu0 %v58
    %83 = vmatmul.f32.gmra.mxu0 %v62
    %v84 = vpop.f32.mrf.mxu0
    %v85 = vadd.f32 0.0, %v84
    %86 = vmatmul.f32.gmra.mxu0 %v65
    %v87 = vpop.f32.mrf.mxu0
    %v88 = vadd.f32 0.0, %v87
    %89 = vdwg.mxu0
    %v90 = vadd.f32 %v54, %v85
    %v91 = vadd.f32 %v55, %v88
    %vm92 = vcmask 261120
    %93 = vst.msk [vmem:[#allocation2] sm:$0xff] %vm92, %v90
    %94 = vst.msk [vmem:[#allocation2 + $0x8] sm:$0xff] %vm92, %v91
    // Predicated region
    $region26: #{tpu_custom_call.1} parent=1 // pred_check
      %p95 = pneg %p47
    $region27: #{tpu_custom_call.1} parent=1 // pred_check_branch
      %97 = sbr.rel (%p95) target = $region29
    $region28: #{tpu_custom_call.1} parent=1 // pred_region
      %v98 = vld [vmem:[#allocation2] sm:$0xff]
      %v99 = vld [vmem:[#allocation2 + $0x8] sm:$0xff]
      %v100 = vld [vmem:[%s2] sm:$0x1]
      %v102 = vperm.slane %v100, 0
      %v104 = vadd.f32 %v98, %v102
      %v105 = vadd.f32 %v99, %v102
      %106 = vst.msk [vmem:[#allocation8] sm:$0xff] %vm92, %v104
      %107 = vst.msk [vmem:[#allocation8 + $0x8] sm:$0xff] %vm92, %v105
    $region29: #{tpu_custom_call.1} parent=1 // pred_fallthru
      _
    // Predicated region
    $region30: #{tpu_custom_call.1} parent=1 // pred_check
      _
    $region31: #{tpu_custom_call.1} parent=1 // pred_check_branch
      %109 = sbr.rel (0) target = $region33
    $region32: #{tpu_custom_call.1} parent=1 // pred_region
      %111 = vsyncadd [#allocation5], 0
      %s112 = sshll.u32 [#allocation8], 4
      %s113 = int_to_ptr.vmem [resolvable:$true] %s112
      %s114 = sshll.u32 %s3, 4
      %s115 = int_to_ptr.hbm [resolvable:$true] %s114
      %120 = dma.vmem_to_hbm [thread:$0]  %s113, 256, %s115, [#allocation5], 128, 128, 8
    $region33: #{tpu_custom_call.1} parent=1 // pred_fallthru
      _
    // Predicated region
    $region34: #{tpu_custom_call.1} parent=1 // pred_check
      _
    $region35: #{tpu_custom_call.1} parent=1 // pred_check_branch
      %122 = sbr.rel (0) target = $region37
    $region36: #{tpu_custom_call.1} parent=1 // pred_region
      %124 = dma.done [#allocation5], 256
    $region37: #{tpu_custom_call.1} parent=1 // pred_fallthru
      _
    %125 = vsyncpa [#allocation4], 1
    %126 = vsyncpa [#allocation7], 1
    %127 = vsyncpa [#allocation5], 1

</llo_original>
